<compile_context>
chip_gen: v7x
topology: tpu7x:2x2x1
jax: 0.10.0
libtpu: 0.0.40
codegen_flags: <defaults>
</compile_context>

<pallas_src>
import functools
import math

import jax
import jax.numpy as jnp
from jax.experimental import pallas as pl
from jax.experimental.pallas import tpu as pltpu


def _round_up(n, m):
    return ((n + m - 1) // m) * m


# --------------------------------------------------------------------------
# Pallas kernel: the full forward hot path on one (row-block) of the batch
# --------------------------------------------------------------------------
def _proposal_kernel(
    x_ref,       # (TB, F)        f32  flattened input rows
    w1_ref,      # (F,  Lh)       f32  ff layer 0 weight (H padded to Lh lanes)
    w2_ref,      # (Lh, Lp)       f32  ff layer 1 weight, fused heads padded to Lp lanes
    bias_ref,    # (2,  L)        f32  row 0 = b1 (padded), row 1 = b2 (padded)
    prior_ref,   # (TB, 2*D)      f32  [prior_loc | prior_scale]
    out_ref,     # (TB, Lp)       f32  lane-dense fused output slab
    *, K, D,
):
    Lh = w1_ref.shape[1]
    Lp = w2_ref.shape[1]
    KD = K * D

    # Prefix slices at lane offset 0 with multiple-of-128 widths -> free.
    b1 = bias_ref[0:1, :Lh]
    b2 = bias_ref[1:2, :Lp]

    # EmbeddingFeedForward: Linear -> relu -> Linear (no final activation).
    h = jnp.dot(x_ref[...], w1_ref[...], preferred_element_type=jnp.float32) + b1
    h = jnp.maximum(h, 0.0)
    y = jnp.dot(h, w2_ref[...], preferred_element_type=jnp.float32) + b2

    # Head layout inside the single 128-lane vreg row:
    #   lanes [0, KD)          : raw means
    #   lanes [KD, 2*KD)       : raw stddevs
    #   lanes [2*KD, 2*KD + K) : raw mixture coefficients
    #   lanes >= 2*KD + K      : zero padding (stripped by the wrapper)
    TB = y.shape[0]
    lane = jax.lax.broadcasted_iota(jnp.int32, (TB, Lp), 1)
    is_mean = lane < KD
    is_std = (lane >= KD) & (lane < 2 * KD)
    is_coeff = (lane >= 2 * KD) & (lane < 2 * KD + K)

    # Masked, numerically stable softmax over the coefficient lanes
    # (exact division -- the per-row denominator costs nothing here).
    neg_big = jnp.float32(-1e30)
    cmax = jnp.max(jnp.where(is_coeff, y, neg_big), axis=1, keepdims=True)
    cexp = jnp.where(is_coeff, jnp.exp(y - cmax), 0.0)
    coeffs = cexp / jnp.sum(cexp, axis=1, keepdims=True)

    # Prior reparameterisation (D == 1, so the (TB, 1) columns broadcast over
    # all lanes):  means = prior_loc + raw * prior_scale ;  stddevs = exp(raw) * prior_scale
    pm = prior_ref[:, 0:D]
    ps = prior_ref[:, D:2 * D]
    means = pm + y * ps
    stds = jnp.exp(y) * ps

    # One lane-dense store; per-lane selects stay on the VPU.
    out_ref[...] = jnp.where(is_mean, means, jnp.where(is_std, stds, coeffs))


# --------------------------------------------------------------------------
# Parameter construction (deterministic, PyTorch-Linear-like init)
# --------------------------------------------------------------------------
def init_params(key, input_dim, output_dim, mixture_components, hidden_dim):
    K, D = mixture_components, output_dim
    ff_out = (2 * D + 1) * K
    k1, k2, k3, k4 = jax.random.split(key, 4)

    bnd1 = 1.0 / math.sqrt(input_dim)
    w1 = jax.random.uniform(k1, (input_dim, hidden_dim), jnp.float32, -bnd1, bnd1)
    b1 = jax.random.uniform(k2, (1, hidden_dim), jnp.float32, -bnd1, bnd1)

    bnd2 = 1.0 / math.sqrt(hidden_dim)
    w2 = jax.random.uniform(k3, (hidden_dim, ff_out), jnp.float32, -bnd2, bnd2)
    b2 = jax.random.uniform(k4, (1, ff_out), jnp.float32, -bnd2, bnd2)

    # Mirror: self._ff._layers[1].weight[K:2K, :].data *= 0
    # The module is only well-defined for D == 1, in which case output units
    # K:2K are exactly the stddevs head; the K*D-based slice keeps the zeroed
    # block on the stddevs head.
    w2 = w2.at[:, K * D:2 * K * D].set(0.0)
    return w1, b1, w2, b2


def prepare_params(params, mixture_components, output_dim):
    """One-time packing of the f32 parameters into kernel-ready form:
    head columns padded to a multiple of 128 lanes (lane-dense output slab),
    both biases packed into a single (2, L) slab (one DMA instead of two)."""
    del mixture_components, output_dim
    w1, b1, w2, b2 = params
    F, H = w1.shape
    P = w2.shape[1]
    Lh = _round_up(H, 128)
    Lp = _round_up(P, 128)
    L = max(Lh, Lp)

    w1p = jnp.zeros((F, Lh), jnp.float32).at[:, :H].set(w1)
    w2p = jnp.zeros((Lh, Lp), jnp.float32).at[:H, :P].set(w2)
    bias = jnp.zeros((2, L), jnp.float32)
    bias = bias.at[0, :H].set(b1[0])
    bias = bias.at[1, :P].set(b2[0])
    return w1p, w2p, bias


# --------------------------------------------------------------------------
# Wrapper (single jitted dispatch: tiny glue + pallas_call)
# --------------------------------------------------------------------------
@functools.partial(jax.jit, static_argnames=("mixture_components", "output_dim"))
def proposal_normal_normal_mixture(x, prior_loc, prior_scale, kernel_params,
                                   *, mixture_components, output_dim):
    """Returns (means, stddevs, coeffs) — the parameters of the Mixture of
    Normals the PyTorch module would construct.
    means/stddevs: (B, K*D), coeffs: (B, K)."""
    K, D = mixture_components, output_dim
    # The original module's prior_stddevs.expand_as(prior_means) only works
    # for D == 1; the in-kernel broadcast relies on the same assumption.
    assert D == 1, "ProposalNormalNormalMixture requires output_dim == 1"

    w1p, w2p, bias = kernel_params
    B = x.shape[0]
    F = w1p.shape[0]
    Lp = w2p.shape[1]
    KD = K * D

    # EmbeddingFeedForward flatten (free metadata reshape inside this jit).
    x2 = x.reshape(B, F).astype(jnp.float32)
    # Tiny (B, 2*D) prior slab: [loc | scale]; broadcast to all lanes in-kernel.
    prior = jnp.concatenate(
        [prior_loc.reshape(B, D), prior_scale.reshape(B, D)], axis=1
    ).astype(jnp.float32)

    # Row-gridded batch axis: grid=(1,) for small B (no extra per-step
    # overhead); large batches shard across both v7x TensorCores.
    TB = B if B <= 128 else 128
    grid = (pl.cdiv(B, TB),)

    out = pl.pallas_call(
        functools.partial(_proposal_kernel, K=K, D=D),
        out_shape=jax.ShapeDtypeStruct((B, Lp), jnp.float32),
        grid=grid,
        in_specs=[
            pl.BlockSpec((TB, F), lambda i: (i, 0)),          # x rows
            pl.BlockSpec(w1p.shape, lambda i: (0, 0)),        # resident weights
            pl.BlockSpec(w2p.shape, lambda i: (0, 0)),
            pl.BlockSpec(bias.shape, lambda i: (0, 0)),
            pl.BlockSpec((TB, 2 * D), lambda i: (i, 0)),      # prior rows
        ],
        out_specs=pl.BlockSpec((TB, Lp), lambda i: (i, 0)),
        compiler_params=pltpu.CompilerParams(
            dimension_semantics=("parallel",)),
    )(x2, w1p, w2p, bias, prior)

    means = out[:, :KD]
    stddevs = out[:, KD:2 * KD]
    coeffs = out[:, 2 * KD:2 * KD + K]

    # TODO(synk): the PyTorch module wraps these in Normal/Mixture distribution
    # objects; distribution objects have no Pallas equivalent, so we return
    # the mixture parameters directly.
    return means, stddevs, coeffs


# --------------------------------------------------------------------------
# Pure-JAX reference (mirrors the PyTorch forward) for correctness checking
# --------------------------------------------------------------------------
def _reference(x, prior_loc, prior_scale, params, K, D):
    w1, b1, w2, b2 = params
    B = x.shape[0]
    h = jnp.maximum(x.reshape(B, -1) @ w1 + b1, 0.0)
    y = h @ w2 + b2
    KD = K * D
    means = y[:, :KD]
    stddevs = jnp.exp(y[:, KD:2 * KD])
    coeffs = jax.nn.softmax(y[:, 2 * KD:], axis=1)
    pm = jnp.tile(prior_loc.reshape(B, D), (1, K))       # repeat(1, K)
    ps = jnp.tile(prior_scale.reshape(B, D), (1, K))     # expand_as (D == 1)
    return pm + means * ps, stddevs * ps, coeffs


# --------------------------------------------------------------------------
if __name__ == "__main__":
    # Small shapes consistent with the module:
    #   input_shape = (4, 16) -> F = 64, output_shape = (1,) -> D = 1,
    #   mixture_components K = 10, hidden_dim = 32, batch = 2.
    B = 2
    input_shape = (4, 16)
    F = 4 * 16
    D = 1
    K = 10
    H = 32

    key = jax.random.PRNGKey(0)
    kp, kx, kl, ks = jax.random.split(key, 4)

    params = init_params(kp, F, D, K, H)            # f32, PyTorch-like layout
    kernel_params = prepare_params(params, K, D)    # padded / packed, once

    x = jax.random.normal(kx, (B,) + input_shape, jnp.float32)
    prior_loc = jax.random.normal(kl, (B, D), jnp.float32)        # batched prior
    prior_scale = jnp.exp(0.3 * jax.random.normal(ks, (B, D), jnp.float32))

    means, stddevs, coeffs = proposal_normal_normal_mixture(
        x, prior_loc, prior_scale, kernel_params,
        mixture_components=K, output_dim=D)
    jax.block_until_ready((means, stddevs, coeffs))

    ref_means, ref_stddevs, ref_coeffs = _reference(
        x, prior_loc, prior_scale, params, K, D)

    assert means.shape == (B, K * D)
    assert stddevs.shape == (B, K * D)
    assert coeffs.shape == (B, K)
    assert bool(jnp.all(stddevs > 0))
    # Exact division now -> tight normalisation tolerance.
    assert bool(jnp.allclose(jnp.sum(coeffs, axis=1), 1.0, atol=1e-5))
    # Parity with the pure-JAX reference of the PyTorch forward.
    assert bool(jnp.allclose(means, ref_means, rtol=2e-2, atol=5e-3))
    assert bool(jnp.allclose(stddevs, ref_stddevs, rtol=2e-2, atol=5e-3))
    assert bool(jnp.allclose(coeffs, ref_coeffs, rtol=2e-2, atol=5e-3))

    print("KERNEL_OK")
</pallas_src>

<mosaic_0001>
module attributes {stable_mosaic.version = 11 : i64} {
  func.func @_proposal_kernel(%arg0: i32, %arg1: memref<2x64xf32, #tpu.memory_space<vmem>>, %arg2: memref<64x128xf32, #tpu.memory_space<vmem>>, %arg3: memref<128x128xf32, #tpu.memory_space<vmem>>, %arg4: memref<2x128xf32, #tpu.memory_space<vmem>>, %arg5: memref<2x2xf32, #tpu.memory_space<vmem>>, %arg6: memref<2x128xf32, #tpu.memory_space<vmem>>) attributes {dimension_semantics = [#tpu.dimension_semantics<parallel>], iteration_bounds = array<i64: 1>, scalar_prefetch = 0 : i64, scratch_operands = 0 : i64, tpu.core_type = #tpu.core_type<tc>, window_params = [{transform_indices = @transform_0, window_bounds = array<i64: 2, 64>}, {pipeline_mode = #tpu.pipeline_mode<synchronous>, transform_indices = @transform_1, window_bounds = array<i64: 64, 128>}, {pipeline_mode = #tpu.pipeline_mode<synchronous>, transform_indices = @transform_2, window_bounds = array<i64: 128, 128>}, {pipeline_mode = #tpu.pipeline_mode<synchronous>, transform_indices = @transform_3, window_bounds = array<i64: 2, 128>}, {transform_indices = @transform_4, window_bounds = array<i64: 2, 2>}, {transform_indices = @transform_5, window_bounds = array<i64: 2, 128>}]} {
    %c0 = arith.constant 0 : index
    %c0_0 = arith.constant 0 : index
    %0 = vector.load %arg4[%c0, %c0_0] : memref<2x128xf32, #tpu.memory_space<vmem>>, vector<1x128xf32>
    %c1 = arith.constant 1 : index
    %c0_1 = arith.constant 0 : index
    %1 = vector.load %arg4[%c1, %c0_1] : memref<2x128xf32, #tpu.memory_space<vmem>>, vector<1x128xf32>
    %c0_2 = arith.constant 0 : index
    %c0_3 = arith.constant 0 : index
    %2 = vector.load %arg1[%c0_2, %c0_3] : memref<2x64xf32, #tpu.memory_space<vmem>>, vector<2x64xf32>
    %c0_4 = arith.constant 0 : index
    %c0_5 = arith.constant 0 : index
    %3 = vector.load %arg2[%c0_4, %c0_5] : memref<64x128xf32, #tpu.memory_space<vmem>>, vector<64x128xf32>
    %cst = arith.constant dense<0.000000e+00> : vector<2x128xf32>
    %4 = tpu.matmul %2, %3, %cst {dimension_numbers = #tpu.dot_dimension_numbers<[1], [0], [0], [1], [0, 0, 1, 1], [], []>} : vector<2x64xf32>, vector<64x128xf32>, vector<2x128xf32> -> vector<2x128xf32>
    %5 = vector.broadcast %0 : vector<1x128xf32> to vector<2x128xf32>
    %6 = arith.addf %4, %5 : vector<2x128xf32>
    %cst_6 = arith.constant 0.000000e+00 : f32
    %7 = vector.broadcast %cst_6 : f32 to vector<2x128xf32>
    %8 = arith.maximumf %6, %7 : vector<2x128xf32>
    %c0_7 = arith.constant 0 : index
    %c0_8 = arith.constant 0 : index
    %9 = vector.load %arg3[%c0_7, %c0_8] : memref<128x128xf32, #tpu.memory_space<vmem>>, vector<128x128xf32>
    %cst_9 = arith.constant dense<0.000000e+00> : vector<2x128xf32>
    %10 = tpu.matmul %8, %9, %cst_9 {dimension_numbers = #tpu.dot_dimension_numbers<[1], [0], [0], [1], [0, 0, 1, 1], [], []>} : vector<2x128xf32>, vector<128x128xf32>, vector<2x128xf32> -> vector<2x128xf32>
    %11 = vector.broadcast %1 : vector<1x128xf32> to vector<2x128xf32>
    %12 = arith.addf %10, %11 : vector<2x128xf32>
    %13 = tpu.iota {dimensions = array<i32: 1>} : vector<2x128xi32>
    %c10_i32 = arith.constant 10 : i32
    %14 = vector.broadcast %c10_i32 : i32 to vector<2x128xi32>
    %15 = arith.cmpi slt, %13, %14 : vector<2x128xi32>
    %c10_i32_10 = arith.constant 10 : i32
    %16 = vector.broadcast %c10_i32_10 : i32 to vector<2x128xi32>
    %17 = arith.cmpi sge, %13, %16 : vector<2x128xi32>
    %c20_i32 = arith.constant 20 : i32
    %18 = vector.broadcast %c20_i32 : i32 to vector<2x128xi32>
    %19 = arith.cmpi slt, %13, %18 : vector<2x128xi32>
    %20 = arith.andi %17, %19 : vector<2x128xi1>
    %c20_i32_11 = arith.constant 20 : i32
    %21 = vector.broadcast %c20_i32_11 : i32 to vector<2x128xi32>
    %22 = arith.cmpi sge, %13, %21 : vector<2x128xi32>
    %c30_i32 = arith.constant 30 : i32
    %23 = vector.broadcast %c30_i32 : i32 to vector<2x128xi32>
    %24 = arith.cmpi slt, %13, %23 : vector<2x128xi32>
    %25 = arith.andi %22, %24 : vector<2x128xi1>
    %cst_12 = arith.constant -1.000000e+30 : f32
    %26 = vector.broadcast %cst_12 : f32 to vector<2x128xf32>
    %27 = arith.select %25, %12, %26 : vector<2x128xi1>, vector<2x128xf32>
    %cst_13 = arith.constant dense<0xFF800000> : vector<2xf32>
    %28 = vector.multi_reduction <maximumf>, %27, %cst_13 [1] : vector<2x128xf32> to vector<2xf32>
    %29 = vector.shape_cast %28 : vector<2xf32> to vector<2x1xf32>
    %30 = vector.broadcast %29 : vector<2x1xf32> to vector<2x128xf32>
    %31 = arith.subf %12, %30 : vector<2x128xf32>
    %32 = math.exp %31 : vector<2x128xf32>
    %cst_14 = arith.constant 0.000000e+00 : f32
    %33 = vector.broadcast %cst_14 : f32 to vector<2x128xf32>
    %34 = arith.select %25, %32, %33 : vector<2x128xi1>, vector<2x128xf32>
    %cst_15 = arith.constant dense<0.000000e+00> : vector<2xf32>
    %35 = vector.multi_reduction <add>, %34, %cst_15 [1] : vector<2x128xf32> to vector<2xf32>
    %36 = vector.shape_cast %35 : vector<2xf32> to vector<2x1xf32>
    %37 = vector.broadcast %36 : vector<2x1xf32> to vector<2x128xf32>
    %38 = arith.divf %34, %37 : vector<2x128xf32>
    %c0_16 = arith.constant 0 : index
    %c0_17 = arith.constant 0 : index
    %39 = vector.load %arg5[%c0_16, %c0_17] : memref<2x2xf32, #tpu.memory_space<vmem>>, vector<2x1xf32>
    %c0_18 = arith.constant 0 : index
    %c1_19 = arith.constant 1 : index
    %40 = vector.load %arg5[%c0_18, %c1_19] : memref<2x2xf32, #tpu.memory_space<vmem>>, vector<2x1xf32>
    %41 = vector.broadcast %40 : vector<2x1xf32> to vector<2x128xf32>
    %42 = arith.mulf %12, %41 : vector<2x128xf32>
    %43 = vector.broadcast %39 : vector<2x1xf32> to vector<2x128xf32>
    %44 = arith.addf %43, %42 : vector<2x128xf32>
    %45 = math.exp %12 : vector<2x128xf32>
    %46 = vector.broadcast %40 : vector<2x1xf32> to vector<2x128xf32>
    %47 = arith.mulf %45, %46 : vector<2x128xf32>
    %48 = arith.select %20, %47, %38 : vector<2x128xi1>, vector<2x128xf32>
    %49 = arith.select %15, %44, %48 : vector<2x128xi1>, vector<2x128xf32>
    %c0_20 = arith.constant 0 : index
    %c0_21 = arith.constant 0 : index
    %50 = vector.load %arg6[%c0_20, %c0_21] : memref<2x128xf32, #tpu.memory_space<vmem>>, vector<2x128xf32>
    tpu.vector_store %arg6[%c0_20, %c0_21], %49 {strides = array<i32>} : memref<2x128xf32, #tpu.memory_space<vmem>>, vector<2x128xf32>,
    return
  }
  func.func @transform_0(%arg0: i32) -> (i32, i32) {
    %c0_i32 = arith.constant 0 : i32
    %c0_i32_0 = arith.constant 0 : i32
    return %arg0, %c0_i32 : i32, i32
  }
  func.func @transform_1(%arg0: i32) -> (i32, i32) {
    %c0_i32 = arith.constant 0 : i32
    %c0_i32_0 = arith.constant 0 : i32
    %c0_i32_1 = arith.constant 0 : i32
    return %c0_i32, %c0_i32_0 : i32, i32
  }
  func.func @transform_2(%arg0: i32) -> (i32, i32) {
    %c0_i32 = arith.constant 0 : i32
    %c0_i32_0 = arith.constant 0 : i32
    %c0_i32_1 = arith.constant 0 : i32
    return %c0_i32, %c0_i32_0 : i32, i32
  }
  func.func @transform_3(%arg0: i32) -> (i32, i32) {
    %c0_i32 = arith.constant 0 : i32
    %c0_i32_0 = arith.constant 0 : i32
    %c0_i32_1 = arith.constant 0 : i32
    return %c0_i32, %c0_i32_0 : i32, i32
  }
  func.func @transform_4(%arg0: i32) -> (i32, i32) {
    %c0_i32 = arith.constant 0 : i32
    %c0_i32_0 = arith.constant 0 : i32
    return %arg0, %c0_i32 : i32, i32
  }
  func.func @transform_5(%arg0: i32) -> (i32, i32) {
    %c0_i32 = arith.constant 0 : i32
    %c0_i32_0 = arith.constant 0 : i32
    return %arg0, %c0_i32 : i32, i32
  }
}

</mosaic_0001>

<llo_original>
// kernel: proposal_normal_normal_mixture.1
$region0: #{proposal_normal_normal_mixture.1}
  #allocation0 [shape = 'u32[]', space=smem, size = 0x4, offset = 0x4, fixed_abs, tag = 'smem constant byte address 0x4 - core index']
  #allocation1 [shape = 'u32[144,128]{1,0:T(1,128)}', space=vmem, size = 0x12000, scoped, tag = 'internal scratch']
  %s0 = inlined_call_operand.vmem [shape: f32[2,64], index: 0, kind: input, shape index: {}]
  %s1 = inlined_call_operand.hbm [shape: f32[64,128], index: 1, kind: input, shape index: {}]
  %s2 = inlined_call_operand.hbm [shape: f32[128,128], index: 2, kind: input, shape index: {}]
  %s3 = inlined_call_operand.vmem [shape: f32[2,128], index: 3, kind: input, shape index: {}]
  %s4 = inlined_call_operand.vmem [shape: f32[2,2], index: 4, kind: input, shape index: {}]
  %s5 = inlined_call_operand.vmem [shape: f32[2,128], index: 5, kind: output, shape index: {}]
  %s6 = sld [smem:[#allocation0]]
  $region38: #{proposal_normal_normal_mixture.1} parent=0
    _
  %s8 = ssub.s32 1, %s6
  %s9 = scalar_select 0, %s8, %s6
  $region1: #{proposal_normal_normal_mixture.1} parent=0
    #allocation2 [shape = 'u8[32768]{0}', space=vmem, size = 0x8000, scoped, tag = 'input window, operand 1, single buffered']
    #allocation3 [shape = 's32[1]{0}', space=sflag, size = 0x4, scoped, tag = 'scoped memory for proposal_normal_normal_mixture.1']
    #allocation4 [shape = 'u8[65536]{0}', space=vmem, size = 0x10000, scoped, tag = 'input window, operand 2, single buffered']
    #allocation5 [shape = 's32[1]{0}', space=sflag, size = 0x4, scoped, tag = 'scoped memory for proposal_normal_normal_mixture.1']
    %10 = vsyncpa [#allocation3], 0
    %11 = vsyncpa [#allocation5], 0
    // Predicated region
    $region2: #{proposal_normal_normal_mixture.1} parent=1 // pred_check
      _
    $region3: #{proposal_normal_normal_mixture.1} parent=1 // pred_check_branch
      %13 = sbr.rel (0) target = $region5
    $region4: #{proposal_normal_normal_mixture.1} parent=1 // pred_region
      _
    $region5: #{proposal_normal_normal_mixture.1} parent=1 // pred_fallthru
      _
    // Predicated region
    $region6: #{proposal_normal_normal_mixture.1} parent=1 // pred_check
      _
    $region7: #{proposal_normal_normal_mixture.1} parent=1 // pred_check_branch
      %15 = sbr.rel (0) target = $region9
    $region8: #{proposal_normal_normal_mixture.1} parent=1 // pred_region
      %s17 = ssub.s32 1024, 1024
      %18 = vsyncadd [#allocation3], %s17
      %s19 = sshll.u32 [#allocation2], 4
      %s20 = int_to_ptr.vmem [resolvable:$true] %s19
      %25 = dma.hbm_to_vmem [thread:$0]  %s1, 1024, %s20, [#allocation3], 128, 128, 8
    $region9: #{proposal_normal_normal_mixture.1} parent=1 // pred_fallthru
      _
    // Predicated region
    $region10: #{proposal_normal_normal_mixture.1} parent=1 // pred_check
      _
    $region11: #{proposal_normal_normal_mixture.1} parent=1 // pred_check_branch
      %27 = sbr.rel (0) target = $region13
    $region12: #{proposal_normal_normal_mixture.1} parent=1 // pred_region
      %s29 = ssub.s32 2048, 2048
      %30 = vsyncadd [#allocation5], %s29
      %s31 = sshll.u32 [#allocation4], 4
      %s32 = int_to_ptr.vmem [resolvable:$true] %s31
      %37 = dma.hbm_to_vmem [thread:$0]  %s2, 2048, %s32, [#allocation5], 128, 128, 8
    $region13: #{proposal_normal_normal_mixture.1} parent=1 // pred_fallthru
      _
    // Predicated region
    $region14: #{proposal_normal_normal_mixture.1} parent=1 // pred_check
      _
    $region15: #{proposal_normal_normal_mixture.1} parent=1 // pred_check_branch
      %39 = sbr.rel (0) target = $region17
    $region16: #{proposal_normal_normal_mixture.1} parent=1 // pred_region
      _
    $region17: #{proposal_normal_normal_mixture.1} parent=1 // pred_fallthru
      _
    // Predicated region
    $region18: #{proposal_normal_normal_mixture.1} parent=1 // pred_check
      _
    $region19: #{proposal_normal_normal_mixture.1} parent=1 // pred_check_branch
      %41 = sbr.rel (0) target = $region21
    $region20: #{proposal_normal_normal_mixture.1} parent=1 // pred_region
      _
    $region21: #{proposal_normal_normal_mixture.1} parent=1 // pred_fallthru
      _
    // Predicated region
    $region22: #{proposal_normal_normal_mixture.1} parent=1 // pred_check
      _
    $region23: #{proposal_normal_normal_mixture.1} parent=1 // pred_check_branch
      %43 = sbr.rel (0) target = $region25
    $region24: #{proposal_normal_normal_mixture.1} parent=1 // pred_region
      %44 = dma.done [#allocation3], 1024
    $region25: #{proposal_normal_normal_mixture.1} parent=1 // pred_fallthru
      _
    // Predicated region
    $region26: #{proposal_normal_normal_mixture.1} parent=1 // pred_check
      _
    $region27: #{proposal_normal_normal_mixture.1} parent=1 // pred_check_branch
      %46 = sbr.rel (0) target = $region29
    $region28: #{proposal_normal_normal_mixture.1} parent=1 // pred_region
      %47 = dma.done [#allocation5], 2048
    $region29: #{proposal_normal_normal_mixture.1} parent=1 // pred_fallthru
      _
    %v48 = vld [vmem:[%s3] sm:$0x1]
    %v49 = vld [vmem:[%s3 + $0x1] sm:$0x1]
    %v50 = vld [vmem:[%s0] sm:$0x3]
    %v51 = vld [vmem:[#allocation2] sm:$0xff]
    %v52 = vld [vmem:[#allocation2 + $0x8] sm:$0xff]
    %v53 = vld [vmem:[#allocation2 + $0x10] sm:$0xff]
    %v54 = vld [vmem:[#allocation2 + $0x18] sm:$0xff]
    %v55 = vld [vmem:[#allocation2 + $0x20] sm:$0xff]
    %v56 = vld [vmem:[#allocation2 + $0x28] sm:$0xff]
    %v57 = vld [vmem:[#allocation2 + $0x30] sm:$0xff]
    %v58 = vld [vmem:[#allocation2 + $0x38] sm:$0xff]
    %v59 = vlaneseq
    %v60 = vshrl.u32 %v59, 7
    %v61 = vsub.s32 0, %v60
    %v62 = vrot.slane %v48, %v61
    %vm63 = vcmask 523264
    %v65 = vsel %vm63, %v50, 0
    %67 = vmatprep.subr.mxu0 0.0
    %68 = vmatpush1.msra.mxu0 %v51
    %69 = vmatprep.subr.mxu0 0.0
    %70 = vmatpush1.msra.mxu0 %v52
    %71 = vmatprep.subr.mxu0 0.0
    %72 = vmatpush1.msra.mxu0 %v53
    %73 = vmatprep.subr.mxu0 0.0
    %74 = vmatpush1.msra.mxu0 %v54
    %75 = vmatprep.subr.mxu0 0.0
    %76 = vmatpush1.msra.mxu0 %v55
    %77 = vmatprep.subr.mxu0 0.0
    %78 = vmatpush1.msra.mxu0 %v56
    %79 = vmatprep.subr.mxu0 0.0
    %80 = vmatpush1.msra.mxu0 %v57
    %81 = vmatprep.subr.mxu0 0.0
    %82 = vmatpush1.msra.mxu0 %v58
    %83 = vmatprep.subr.mxu0 0.0
    %84 = vmatpush1.msra.mxu0 0.0
    %85 = vmatprep.subr.mxu0 0.0
    %86 = vmatpush1.msra.mxu0 0.0
    %87 = vmatprep.subr.mxu0 0.0
    %88 = vmatpush1.msra.mxu0 0.0
    %89 = vmatprep.subr.mxu0 0.0
    %90 = vmatpush1.msra.mxu0 0.0
    %91 = vmatprep.subr.mxu0 0.0
    %92 = vmatpush1.msra.mxu0 0.0
    %93 = vmatprep.subr.mxu0 0.0
    %94 = vmatpush1.msra.mxu0 0.0
    %95 = vmatprep.subr.mxu0 0.0
    %96 = vmatpush1.msra.mxu0 0.0
    %97 = vmatprep.subr.mxu0 0.0
    %98 = vmatpush1.msra.mxu0 0.0
    %99 = vmatprep.subr.mxu0 0.0
    %100 = vmatpush1.msra.mxu0 0.0
    %101 = vmatprep.subr.mxu0 0.0
    %102 = vmatpush1.msra.mxu0 0.0
    %103 = vmatprep.subr.mxu0 0.0
    %104 = vmatpush1.msra.mxu0 0.0
    %105 = vmatprep.subr.mxu0 0.0
    %106 = vmatpush1.msra.mxu0 0.0
    %107 = vmatprep.subr.mxu0 0.0
    %108 = vmatpush1.msra.mxu0 0.0
    %109 = vmatprep.subr.mxu0 0.0
    %110 = vmatpush1.msra.mxu0 0.0
    %111 = vmatprep.subr.mxu0 0.0
    %112 = vmatpush1.msra.mxu0 0.0
    %113 = vmatprep.subr.mxu0 0.0
    %114 = vmatpush1.msra.mxu0 0.0
    %115 = vmatprep.subr.mxu0 0.0
    %116 = vmatpush1.msra.mxu0 0.0
    %117 = vmatprep.subr.mxu0 0.0
    %118 = vmatpush1.msra.mxu0 0.0
    %119 = vmatprep.subr.mxu0 0.0
    %120 = vmatpush1.msra.mxu0 0.0
    %121 = vmatprep.subr.mxu0 0.0
    %122 = vmatpush1.msra.mxu0 0.0
    %123 = vmatprep.subr.mxu0 0.0
    %124 = vmatpush1.msra.mxu0 0.0
    %125 = vmatprep.subr.mxu0 0.0
    %126 = vmatpush1.msra.mxu0 0.0
    %127 = vmatprep.subr.mxu0 0.0
    %128 = vmatpush1.msra.mxu0 0.0
    %129 = vmatprep.subr.mxu0 0.0
    %130 = vmatpush1.msra.mxu0 0.0
    %131 = vmatprep.mubr.f32.mxu0 0.0
    %132 = vmatmul.mubr.f32.gmra.mrb[0].mxu0 %v65
    %v133 = vpop.f32.mrb[0].mxu0
    %v134 = vadd.f32 %v62, %v133
    %v135 = vpop.f32.mrb[0].mxu0
    %136 = vdwg.mxu0
    %v137 = vmax.f32 %v134, 0.0
    %v138 = vld [vmem:[#allocation4] sm:$0xff]
    %v139 = vld [vmem:[#allocation4 + $0x8] sm:$0xff]
    %v140 = vld [vmem:[#allocation4 + $0x10] sm:$0xff]
    %v141 = vld [vmem:[#allocation4 + $0x18] sm:$0xff]
    %v142 = vld [vmem:[#allocation4 + $0x20] sm:$0xff]
    %v143 = vld [vmem:[#allocation4 + $0x28] sm:$0xff]
    %v144 = vld [vmem:[#allocation4 + $0x30] sm:$0xff]
    %v145 = vld [vmem:[#allocation4 + $0x38] sm:$0xff]
    %v146 = vld [vmem:[#allocation4 + $0x40] sm:$0xff]
    %v147 = vld [vmem:[#allocation4 + $0x48] sm:$0xff]
    %v148 = vld [vmem:[#allocation4 + $0x50] sm:$0xff]
    %v149 = vld [vmem:[#allocation4 + $0x58] sm:$0xff]
    %v150 = vld [vmem:[#allocation4 + $0x60] sm:$0xff]
    %v151 = vld [vmem:[#allocation4 + $0x68] sm:$0xff]
    %v152 = vld [vmem:[#allocation4 + $0x70] sm:$0xff]
    %v153 = vld [vmem:[#allocation4 + $0x78] sm:$0xff]
    %v154 = vlaneseq
    %v155 = vshrl.u32 %v154, 7
    %v156 = vsub.s32 0, %v155
    %v157 = vrot.slane %v49, %v156
    %158 = vmatprep.subr.mxu0 0.0
    %159 = vmatpush1.msra.mxu0 %v138
    %160 = vmatprep.subr.mxu0 0.0
    %161 = vmatpush1.msra.mxu0 %v139
    %162 = vmatprep.subr.mxu0 0.0
    %163 = vmatpush1.msra.mxu0 %v140
    %164 = vmatprep.subr.mxu0 0.0
    %165 = vmatpush1.msra.mxu0 %v141
    %166 = vmatprep.subr.mxu0 0.0
    %167 = vmatpush1.msra.mxu0 %v142
    %168 = vmatprep.subr.mxu0 0.0
    %169 = vmatpush1.msra.mxu0 %v143
    %170 = vmatprep.subr.mxu0 0.0
    %171 = vmatpush1.msra.mxu0 %v144
    %172 = vmatprep.subr.mxu0 0.0
    %173 = vmatpush1.msra.mxu0 %v145
    %174 = vmatprep.subr.mxu0 0.0
    %175 = vmatpush1.msra.mxu0 %v146
    %176 = vmatprep.subr.mxu0 0.0
    %177 = vmatpush1.msra.mxu0 %v147
    %178 = vmatprep.subr.mxu0 0.0
    %179 = vmatpush1.msra.mxu0 %v148
    %180 = vmatprep.subr.mxu0 0.0
    %181 = vmatpush1.msra.mxu0 %v149
    %182 = vmatprep.subr.mxu0 0.0
    %183 = vmatpush1.msra.mxu0 %v150
    %184 = vmatprep.subr.mxu0 0.0
    %185 = vmatpush1.msra.mxu0 %v151
    %186 = vmatprep.subr.mxu0 0.0
    %187 = vmatpush1.msra.mxu0 %v152
    %188 = vmatprep.subr.mxu0 0.0
    %189 = vmatpush1.msra.mxu0 %v153
    %190 = vmatprep.subr.mxu0 0.0
    %191 = vmatpush1.msra.mxu0 0.0
    %192 = vmatprep.subr.mxu0 0.0
    %193 = vmatpush1.msra.mxu0 0.0
    %194 = vmatprep.subr.mxu0 0.0
    %195 = vmatpush1.msra.mxu0 0.0
    %196 = vmatprep.subr.mxu0 0.0
    %197 = vmatpush1.msra.mxu0 0.0
    %198 = vmatprep.subr.mxu0 0.0
    %199 = vmatpush1.msra.mxu0 0.0
    %200 = vmatprep.subr.mxu0 0.0
    %201 = vmatpush1.msra.mxu0 0.0
    %202 = vmatprep.subr.mxu0 0.0
    %203 = vmatpush1.msra.mxu0 0.0
    %204 = vmatprep.subr.mxu0 0.0
    %205 = vmatpush1.msra.mxu0 0.0
    %206 = vmatprep.subr.mxu0 0.0
    %207 = vmatpush1.msra.mxu0 0.0
    %208 = vmatprep.subr.mxu0 0.0
    %209 = vmatpush1.msra.mxu0 0.0
    %210 = vmatprep.subr.mxu0 0.0
    %211 = vmatpush1.msra.mxu0 0.0
    %212 = vmatprep.subr.mxu0 0.0
    %213 = vmatpush1.msra.mxu0 0.0
    %214 = vmatprep.subr.mxu0 0.0
    %215 = vmatpush1.msra.mxu0 0.0
    %216 = vmatprep.subr.mxu0 0.0
    %217 = vmatpush1.msra.mxu0 0.0
    %218 = vmatprep.subr.mxu0 0.0
    %219 = vmatpush1.msra.mxu0 0.0
    %220 = vmatprep.subr.mxu0 0.0
    %221 = vmatpush1.msra.mxu0 0.0
    %222 = vmatprep.mubr.f32.mxu0 0.0
    %223 = vmatmul.mubr.f32.gmra.mrb[0].mxu0 %v137
    %v224 = vpop.f32.mrb[0].mxu0
    %v225 = vadd.f32 %v157, %v224
    %v226 = vpop.f32.mrb[0].mxu0
    %227 = vdwg.mxu0
    %v228 = vlaneseq
    %v229 = vand.u32 %v228, 127
    %vm230 = vcmp.lt.s32.totalorder %v229, 10
    %vm231 = vcmp.ge.s32.totalorder %v229, 10
    %vm232 = vcmp.lt.s32.totalorder %v229, 20
    %vm233 = vmand %vm231, %vm232
    %vm234 = vcmp.ge.s32.totalorder %v229, 20
    %vm235 = vcmp.lt.s32.totalorder %v229, 30
    %vm236 = vmand %vm234, %vm235
    %v237 = vsel %vm236, %v225, -1e+30
    %vm238 = vcmask 1041408
    %v239 = vsel %vm238, %v237, -inf
    %240 = vmax.xlane.f32.xlu0 %v239
    %v241 = vpop.xlane.xlu0 %240
    %v242 = vsub.f32 %v225, %v241
    %v243 = vmul.f32 %v242, 1.442695
    %v244 = vpow.pop %v243
    %v245 = vsel %vm236, %v244, 0.0
    %v246 = vsel %vm238, %v245, 0.0
    %247 = vadd.xlane.f32.xlu0 %v246
    %v248 = vpop.xlane.xlu0 %247
    %v249 = vrcp.pop %v248
    %v250 = vmul.f32 %v245, %v249
    %v251 = vld [vmem:[%s4] sm:$0x3]
    %253 = vset.pattern.permute.xlu0 1
    %254 = vperm.xlu0 %253, %v251
    %v255 = vpop.permute.xlu0 %254
    %v257 = vmul.f32 %v225, %v255
    %258 = vset.pattern.permute.xlu0 0
    %259 = vperm.xlu0 %258, %v251
    %v260 = vpop.permute.xlu0 %259
    %v262 = vadd.f32 %v260, %v257
    %v263 = vmul.f32 %v225, 1.442695
    %v264 = vpow.pop %v263
    %v265 = vmul.f32 %v264, %v255
    %v266 = vsel %vm233, %v265, %v250
    %v267 = vsel %vm230, %v262, %v266
    %268 = vst [vmem:[%s5] sm:$0x3] %v267
    // Predicated region
    $region30: #{proposal_normal_normal_mixture.1} parent=1 // pred_check
      _
    $region31: #{proposal_normal_normal_mixture.1} parent=1 // pred_check_branch
      %270 = sbr.rel (0) target = $region33
    $region32: #{proposal_normal_normal_mixture.1} parent=1 // pred_region
      _
    $region33: #{proposal_normal_normal_mixture.1} parent=1 // pred_fallthru
      _
    // Predicated region
    $region34: #{proposal_normal_normal_mixture.1} parent=1 // pred_check
      _
    $region35: #{proposal_normal_normal_mixture.1} parent=1 // pred_check_branch
      %272 = sbr.rel (0) target = $region37
    $region36: #{proposal_normal_normal_mixture.1} parent=1 // pred_region
      _
    $region37: #{proposal_normal_normal_mixture.1} parent=1 // pred_fallthru
      _
    %273 = vsyncpa [#allocation3], 1
    %274 = vsyncpa [#allocation5], 1

</llo_original>
